<compile_context>
chip_gen: v5e
topology: v5e:2x2
jax: 0.10.0
libtpu: 0.0.40
codegen_flags: <defaults>
</compile_context>

<pallas_src>
import jax
import jax.numpy as jnp
from jax.experimental import pallas as pl
from jax.experimental.pallas import tpu as pltpu


_SUBLANE = 8     # f32 sublane quantum (accumulator / output are f32)
_LANE = 128      # lane quantum


def _round_up(x: int, m: int) -> int:
    return (x + m - 1) // m * m


# ----------------------------- Pallas kernel --------------------------------

def _linear_kernel(x_ref, w_ref, b_ref, o_ref, acc_ref):
    """One (Bp, tn) output tile, streamed over the contraction (KF) grid axis.

    x_ref: (Bp, tk) bf16, w_ref: (tk, tn) bf16, b_ref: (1, tn) f32,
    o_ref: (Bp, tn) f32,  acc_ref: (Bp, tn) f32 VMEM scratch.
    """
    k = pl.program_id(1)

    @pl.when(k == 0)
    def _():
        acc_ref[...] = jnp.zeros_like(acc_ref)

    acc_ref[...] += jnp.dot(x_ref[...], w_ref[...],
                            preferred_element_type=jnp.float32)

    @pl.when(k == pl.num_programs(1) - 1)
    def _():
        # f32 epilogue (bias add) + single final cast.
        o_ref[...] = (acc_ref[...] + b_ref[...]).astype(o_ref.dtype)


def linear_pallas(xc: jax.Array, w: jax.Array, b: jax.Array,
                  *, tn_target: int = 512, tk_target: int = 2048) -> jax.Array:
    """y = xc @ w + b  with bf16-streamed operands and an f32 accumulator.

    xc: (B, KF) float32, w: (KF, N), b: (N,) or (1, N). Returns (B, N) float32.
    """
    B, KF = xc.shape
    KFw, N = w.shape
    assert KF == KFw
    b = b.reshape(1, N)

    # ---- pad to TPU-friendly shapes (skipped when already aligned) ----------
    Bp = _round_up(max(B, _SUBLANE), _SUBLANE)       # full sublanes -> unmasked vst
    tn = min(tn_target, _round_up(N, _LANE))         # wide lane-dense output slab
    tk = min(tk_target, _round_up(KF, _LANE))        # bounded weight-chunk streaming
    Np = _round_up(N, tn)
    KFp = _round_up(KF, tk)

    x_b = xc.astype(jnp.bfloat16)
    w_b = w.astype(jnp.bfloat16)
    b_f = b.astype(jnp.float32)
    if (Bp, KFp) != (B, KF):
        x_b = jnp.zeros((Bp, KFp), jnp.bfloat16).at[:B, :KF].set(x_b)
    if (KFp, Np) != (KF, N):
        w_b = jnp.zeros((KFp, Np), jnp.bfloat16).at[:KF, :N].set(w_b)
    if Np != N:
        b_f = jnp.zeros((1, Np), jnp.float32).at[:, :N].set(b_f)

    grid = (Np // tn, KFp // tk)                     # reduction axis last

    cost = pl.CostEstimate(
        flops=2 * Bp * KFp * Np,
        transcendentals=0,
        bytes_accessed=(x_b.size * 2 + w_b.size * 2 + b_f.size * 4 + Bp * Np * 4),
    )

    y_p = pl.pallas_call(
        _linear_kernel,
        out_shape=jax.ShapeDtypeStruct((Bp, Np), jnp.float32),
        grid_spec=pltpu.PrefetchScalarGridSpec(
            num_scalar_prefetch=0,
            grid=grid,
            in_specs=[
                pl.BlockSpec((Bp, tk), lambda j, k: (0, k)),   # x chunk (reused per j)
                pl.BlockSpec((tk, tn), lambda j, k: (k, j)),   # streamed weight tile
                pl.BlockSpec((1, tn), lambda j, k: (0, j)),    # bias tile
            ],
            out_specs=pl.BlockSpec((Bp, tn), lambda j, k: (0, j)),
            scratch_shapes=[pltpu.VMEM((Bp, tn), jnp.float32)],
        ),
        compiler_params=pltpu.CompilerParams(
            dimension_semantics=("parallel", "arbitrary"),
        ),
        cost_estimate=cost,
    )(x_b, w_b, b_f)

    if (Bp, Np) != (B, N):
        y_p = y_p[:B, :N]
    return y_p


# ------------------------- AdaptFeature forward ------------------------------

def collapse_feature(x: jax.Array) -> jax.Array:
    # (B, K, F, ...) -> (B, K*F, ...)
    shape = list(x.shape)
    shape[1] = shape[1] * shape[2]
    shape.pop(2)
    return x.reshape(shape)


def separate_feature(x: jax.Array, k: int) -> jax.Array:
    # (B, K*H, ...) -> (B, K, H, ...)
    shape = list(x.shape)
    shape[1] = k
    shape.insert(2, -1)
    return x.reshape(shape)


def adapt_feature_forward(x: jax.Array, w: jax.Array, b: jax.Array) -> jax.Array:
    """AdaptFeature(Linear).forward for a single input tensor x of shape (B, K, F)."""
    k = x.shape[1]
    xc = collapse_feature(x)            # (B, K*F)
    y = linear_pallas(xc, w, b)         # (B, K*H)   -- hot path in Pallas
    return separate_feature(y, k)       # (B, K, H)


# ----------------------------------- main ------------------------------------

if __name__ == "__main__":
    B, K, F, H = 2, 4, 32, 32           # population size K=4; collapsed dims = 128

    key = jax.random.PRNGKey(0)
    kx, kw, kb = jax.random.split(key, 3)

    x = jax.random.normal(kx, (B, K, F), dtype=jnp.float32)
    # Deterministic synthetic Linear(K*F -> K*H) parameters.
    w = jax.random.normal(kw, (K * F, K * H), dtype=jnp.float32) * 0.05
    b = jax.random.normal(kb, (1, K * H), dtype=jnp.float32) * 0.05

    fwd = jax.jit(adapt_feature_forward)
    out = jax.block_until_ready(fwd(x, w, b))
    assert out.shape == (B, K, H), out.shape

    # Reference check against plain JAX with the same bf16 operand rounding
    # (the kernel intentionally streams x / w as bf16 with f32 accumulation).
    xc_ref = collapse_feature(x).astype(jnp.bfloat16).astype(jnp.float32)
    w_ref = w.astype(jnp.bfloat16).astype(jnp.float32)
    ref = (xc_ref @ w_ref + b).reshape(B, K, H)
    assert jnp.allclose(out, ref, atol=1e-3, rtol=1e-3)

    print("KERNEL_OK")
</pallas_src>

<mosaic_0001>
module attributes {stable_mosaic.version = 11 : i64} {
  func.func @_linear_kernel(%arg0: i32, %arg1: i32, %arg2: memref<8x128xbf16, #tpu.memory_space<vmem>>, %arg3: memref<128x128xbf16, #tpu.memory_space<vmem>>, %arg4: memref<1x128xf32, #tpu.memory_space<vmem>>, %arg5: memref<8x128xf32, #tpu.memory_space<vmem>>, %arg6: memref<8x128xf32, #tpu.memory_space<vmem>>) attributes {dimension_semantics = [#tpu.dimension_semantics<parallel>, #tpu.dimension_semantics<arbitrary>], iteration_bounds = array<i64: 1, 1>, scalar_prefetch = 0 : i64, scratch_operands = 1 : i64, tpu.core_type = #tpu.core_type<tc>, window_params = [{transform_indices = @transform_0, window_bounds = array<i64: 8, 128>}, {transform_indices = @transform_1, window_bounds = array<i64: 128, 128>}, {transform_indices = @transform_2, window_bounds = array<i64: 1, 128>}, {transform_indices = @transform_3, window_bounds = array<i64: 8, 128>}]} {
    %c0_i32 = arith.constant 0 : i32
    %0 = arith.cmpi eq, %arg1, %c0_i32 : i32
    %1 = arith.extui %0 : i1 to i32
    %c0_i32_0 = arith.constant 0 : i32
    %2 = arith.cmpi ne, %1, %c0_i32_0 : i32
    scf.if %2 {
      %cst_10 = arith.constant 0.000000e+00 : f32
      %12 = vector.broadcast %cst_10 : f32 to vector<8x128xf32>
      %c0_11 = arith.constant 0 : index
      %c0_12 = arith.constant 0 : index
      %13 = vector.load %arg6[%c0_11, %c0_12] : memref<8x128xf32, #tpu.memory_space<vmem>>, vector<8x128xf32>
      tpu.vector_store %arg6[%c0_11, %c0_12], %12 {strides = array<i32>} : memref<8x128xf32, #tpu.memory_space<vmem>>, vector<8x128xf32>,
    } else {
    }
    %c0 = arith.constant 0 : index
    %c0_1 = arith.constant 0 : index
    %3 = vector.load %arg6[%c0, %c0_1] : memref<8x128xf32, #tpu.memory_space<vmem>>, vector<8x128xf32>
    %c0_2 = arith.constant 0 : index
    %c0_3 = arith.constant 0 : index
    %4 = vector.load %arg2[%c0_2, %c0_3] : memref<8x128xbf16, #tpu.memory_space<vmem>>, vector<8x128xbf16>
    %c0_4 = arith.constant 0 : index
    %c0_5 = arith.constant 0 : index
    %5 = vector.load %arg3[%c0_4, %c0_5] : memref<128x128xbf16, #tpu.memory_space<vmem>>, vector<128x128xbf16>
    %cst = arith.constant dense<0.000000e+00> : vector<8x128xf32>
    %6 = tpu.matmul %4, %5, %cst {dimension_numbers = #tpu.dot_dimension_numbers<[1], [0], [0], [1], [0, 0, 1, 1], [], []>} : vector<8x128xbf16>, vector<128x128xbf16>, vector<8x128xf32> -> vector<8x128xf32>
    %7 = arith.addf %3, %6 : vector<8x128xf32>
    %c0_6 = arith.constant 0 : index
    %c0_7 = arith.constant 0 : index
    %8 = vector.load %arg6[%c0_6, %c0_7] : memref<8x128xf32, #tpu.memory_space<vmem>>, vector<8x128xf32>
    tpu.vector_store %arg6[%c0_6, %c0_7], %7 {strides = array<i32>} : memref<8x128xf32, #tpu.memory_space<vmem>>, vector<8x128xf32>,
    %c0_i32_8 = arith.constant 0 : i32
    %9 = arith.cmpi eq, %arg1, %c0_i32_8 : i32
    %10 = arith.extui %9 : i1 to i32
    %c0_i32_9 = arith.constant 0 : i32
    %11 = arith.cmpi ne, %10, %c0_i32_9 : i32
    scf.if %11 {
      %c0_10 = arith.constant 0 : index
      %c0_11 = arith.constant 0 : index
      %12 = vector.load %arg6[%c0_10, %c0_11] : memref<8x128xf32, #tpu.memory_space<vmem>>, vector<8x128xf32>
      %c0_12 = arith.constant 0 : index
      %c0_13 = arith.constant 0 : index
      %13 = vector.load %arg4[%c0_12, %c0_13] : memref<1x128xf32, #tpu.memory_space<vmem>>, vector<1x128xf32>
      %14 = vector.broadcast %13 : vector<1x128xf32> to vector<8x128xf32>
      %15 = arith.addf %12, %14 : vector<8x128xf32>
      %c0_14 = arith.constant 0 : index
      %c0_15 = arith.constant 0 : index
      %16 = vector.load %arg5[%c0_14, %c0_15] : memref<8x128xf32, #tpu.memory_space<vmem>>, vector<8x128xf32>
      tpu.vector_store %arg5[%c0_14, %c0_15], %15 {strides = array<i32>} : memref<8x128xf32, #tpu.memory_space<vmem>>, vector<8x128xf32>,
    } else {
    }
    return
  }
  func.func @transform_0(%arg0: i32, %arg1: i32) -> (i32, i32) {
    %c0_i32 = arith.constant 0 : i32
    %c0_i32_0 = arith.constant 0 : i32
    return %c0_i32, %arg1 : i32, i32
  }
  func.func @transform_1(%arg0: i32, %arg1: i32) -> (i32, i32) {
    %c0_i32 = arith.constant 0 : i32
    return %arg1, %arg0 : i32, i32
  }
  func.func @transform_2(%arg0: i32, %arg1: i32) -> (i32, i32) {
    %c0_i32 = arith.constant 0 : i32
    %c0_i32_0 = arith.constant 0 : i32
    return %c0_i32, %arg0 : i32, i32
  }
  func.func @transform_3(%arg0: i32, %arg1: i32) -> (i32, i32) {
    %c0_i32 = arith.constant 0 : i32
    %c0_i32_0 = arith.constant 0 : i32
    return %c0_i32, %arg0 : i32, i32
  }
}

</mosaic_0001>

<llo_original>
// kernel: adapt_feature_forward.1
$region0: #{adapt_feature_forward.1}
  #allocation0 [shape = 'u32[]', space=smem, size = 0x4, offset = 0x4, fixed_abs, tag = 'smem constant byte address 0x4 - core index']
  #allocation1 [shape = 'u32[72,128]{1,0:T(1,128)}', space=vmem, size = 0x9000, scoped, tag = 'internal scratch']
  #allocation2 [shape = 'f32[8,128]{1,0:T(8,128)}', space=vmem, size = 0x1000, scoped, tag = 'scratch operand']
  %s0 = inlined_call_operand.vmem [shape: bf16[8,128], index: 0, kind: input, shape index: {}]
  %s1 = inlined_call_operand.vmem [shape: bf16[128,128], index: 1, kind: input, shape index: {}]
  %s2 = inlined_call_operand.vmem [shape: f32[1,128], index: 2, kind: input, shape index: {}]
  %s3 = inlined_call_operand.vmem [shape: f32[8,128], index: 3, kind: output, shape index: {}]
  %s4 = sld [smem:[#allocation0]]
  $region30: #{adapt_feature_forward.1} parent=0
    _
  %s6 = ssub.s32 1, %s4
  %s7 = scalar_select 0, %s6, %s4
  // Predicated region
  $region2: #{adapt_feature_forward.1} parent=0 // pred_check
    _
  $region3: #{adapt_feature_forward.1} parent=0 // pred_check_branch
    %9 = sbr.rel (0) target = $region5
  $region4: #{adapt_feature_forward.1} parent=0 // pred_region
    _
  $region5: #{adapt_feature_forward.1} parent=0 // pred_fallthru
    _
  // Predicated region
  $region6: #{adapt_feature_forward.1} parent=0 // pred_check
    _
  $region7: #{adapt_feature_forward.1} parent=0 // pred_check_branch
    %11 = sbr.rel (0) target = $region9
  $region8: #{adapt_feature_forward.1} parent=0 // pred_region
    _
  $region9: #{adapt_feature_forward.1} parent=0 // pred_fallthru
    _
  // Predicated region
  $region10: #{adapt_feature_forward.1} parent=0 // pred_check
    _
  $region11: #{adapt_feature_forward.1} parent=0 // pred_check_branch
    %13 = sbr.rel (0) target = $region13
  $region12: #{adapt_feature_forward.1} parent=0 // pred_region
    _
  $region13: #{adapt_feature_forward.1} parent=0 // pred_fallthru
    _
  %p14 = scmp.eq.s32.totalorder 0, 0
  // Predicated region
  $region14: #{adapt_feature_forward.1} parent=0 // pred_check
    %p15 = pneg %p14
  $region15: #{adapt_feature_forward.1} parent=0 // pred_check_branch
    %17 = sbr.rel (%p15) target = $region17
  $region16: #{adapt_feature_forward.1} parent=0 // pred_region
    %18 = vst [vmem:[#allocation2] sm:$0xff] 0.0
  $region17: #{adapt_feature_forward.1} parent=0 // pred_fallthru
    _
  %v19 = vld [vmem:[#allocation2] sm:$0xff]
  %v20 = vld [vmem:[%s0] sm:$0xf]
  %v21 = vld [vmem:[%s1] sm:$0xf]
  %v22 = vld [vmem:[%s1 + $0x4] sm:$0xf]
  %v23 = vld [vmem:[%s1 + $0x8] sm:$0xf]
  %v24 = vld [vmem:[%s1 + $0xc] sm:$0xf]
  %v25 = vld [vmem:[%s1 + $0x10] sm:$0xf]
  %v26 = vld [vmem:[%s1 + $0x14] sm:$0xf]
  %v27 = vld [vmem:[%s1 + $0x18] sm:$0xf]
  %v28 = vld [vmem:[%s1 + $0x1c] sm:$0xf]
  %v29 = vld [vmem:[%s1 + $0x20] sm:$0xf]
  %v30 = vld [vmem:[%s1 + $0x24] sm:$0xf]
  %v31 = vld [vmem:[%s1 + $0x28] sm:$0xf]
  %v32 = vld [vmem:[%s1 + $0x2c] sm:$0xf]
  %v33 = vld [vmem:[%s1 + $0x30] sm:$0xf]
  %v34 = vld [vmem:[%s1 + $0x34] sm:$0xf]
  %v35 = vld [vmem:[%s1 + $0x38] sm:$0xf]
  %v36 = vld [vmem:[%s1 + $0x3c] sm:$0xf]
  %v53 = vunpack.c.l.b16 %v21
  %v54 = vunpack.c.l.b16 %v22
  %v55 = vunpack.c.l.b16 %v23
  %v56 = vunpack.c.l.b16 %v24
  %v57 = vunpack.c.l.b16 %v25
  %v58 = vunpack.c.l.b16 %v26
  %v59 = vunpack.c.l.b16 %v27
  %v60 = vunpack.c.l.b16 %v28
  %v61 = vunpack.c.l.b16 %v29
  %v62 = vunpack.c.l.b16 %v30
  %v63 = vunpack.c.l.b16 %v31
  %v64 = vunpack.c.l.b16 %v32
  %v65 = vunpack.c.l.b16 %v33
  %v66 = vunpack.c.l.b16 %v34
  %v67 = vunpack.c.l.b16 %v35
  %v68 = vunpack.c.l.b16 %v36
  %v69 = vpack.c.b16 %v54, %v53
  %v70 = vpack.c.b16 %v56, %v55
  %v71 = vpack.c.b16 %v58, %v57
  %v72 = vpack.c.b16 %v60, %v59
  %v73 = vpack.c.b16 %v62, %v61
  %v74 = vpack.c.b16 %v64, %v63
  %v75 = vpack.c.b16 %v66, %v65
  %v76 = vpack.c.b16 %v68, %v67
  %85 = vmatpush.bf16.msra.mxu0 %v76
  %86 = vmatpush.bf16.msra.mxu0 %v75
  %87 = vmatpush.bf16.msra.mxu0 %v74
  %88 = vmatpush.bf16.msra.mxu0 %v73
  %89 = vmatpush.bf16.msra.mxu0 %v72
  %90 = vmatpush.bf16.msra.mxu0 %v71
  %91 = vmatpush.bf16.msra.mxu0 %v70
  %92 = vmatpush.bf16.msra.mxu0 %v69
  %93 = vmatmul.bf16.gmra.mxu0 %v20
  %v94 = vpop.f32.mrf.mxu0
  %v95 = vadd.f32 0.0, %v94
  %v96 = vpop.f32.mrf.mxu0
  %97 = vdwg.mxu0
  %v98 = vadd.f32 %v19, %v95
  %99 = vst [vmem:[#allocation2] sm:$0xff] %v98
  // Predicated region
  $region18: #{adapt_feature_forward.1} parent=0 // pred_check
    %p100 = pneg %p14
  $region19: #{adapt_feature_forward.1} parent=0 // pred_check_branch
    %102 = sbr.rel (%p100) target = $region21
  $region20: #{adapt_feature_forward.1} parent=0 // pred_region
    %v103 = vld [vmem:[#allocation2] sm:$0xff]
    %v104 = vld [vmem:[%s2] sm:$0x1]
    %v106 = vperm.slane %v104, 0
    %v108 = vadd.f32 %v103, %v106
    %109 = vst [vmem:[%s3] sm:$0xff] %v108
  $region21: #{adapt_feature_forward.1} parent=0 // pred_fallthru
    _
  // Predicated region
  $region22: #{adapt_feature_forward.1} parent=0 // pred_check
    _
  $region23: #{adapt_feature_forward.1} parent=0 // pred_check_branch
    %111 = sbr.rel (0) target = $region25
  $region24: #{adapt_feature_forward.1} parent=0 // pred_region
    _
  $region25: #{adapt_feature_forward.1} parent=0 // pred_fallthru
    _
  // Predicated region
  $region26: #{adapt_feature_forward.1} parent=0 // pred_check
    _
  $region27: #{adapt_feature_forward.1} parent=0 // pred_check_branch
    %113 = sbr.rel (0) target = $region29
  $region28: #{adapt_feature_forward.1} parent=0 // pred_region
    _
  $region29: #{adapt_feature_forward.1} parent=0 // pred_fallthru
    _

</llo_original>
